<compile_context>
chip_gen: v6e
topology: v6e:2x2x1
jax: 0.10.0
libtpu: 0.0.40
codegen_flags: <defaults>
</compile_context>

<pallas_src>
import functools

import jax
import jax.numpy as jnp
from jax.experimental import pallas as pl
from jax.experimental.pallas import tpu as pltpu


_LANE = 128
_MiB = 1024 * 1024


def _swish_kernel(x_ref, o_ref):
    x = x_ref[...]
    # Upcast sub-32-bit floats to f32 for the sigmoid (parity with torch's
    # internal upcast; avoids bf16 VPU/EUP gaps on v5e); cast back on store.
    if jnp.issubdtype(x.dtype, jnp.floating) and jnp.dtype(x.dtype).itemsize < 4:
        xf = x.astype(jnp.float32)
    else:
        xf = x
    o_ref[...] = (xf * jax.nn.sigmoid(xf)).astype(o_ref.dtype)


def _sublane_pack(dtype) -> int:
    # f32 -> 8 sublanes/vreg, bf16/f16 -> 16, 8-bit -> 32.
    return max(8, 32 // jnp.dtype(dtype).itemsize)


def _cdiv(a: int, b: int) -> int:
    return -(-a // b)


@functools.lru_cache(maxsize=1)
def _chip_config():
    """Per-generation tiling config.

    Returns (block_bytes, vmem_limit_bytes_or_None, num_tensorcores, deep_buffer).
    """
    kind = ""
    try:
        kind = (jax.devices()[0].device_kind or "").lower()
    except Exception:
        pass

    if ("v7" in kind) or ("7x" in kind) or ("tpu7" in kind):
        # v7x: ~3.2 TB/s per TC, 64 MiB VMEM/TC, 2 TensorCores.  8 MiB blocks
        # cut the per-step overhead tax to ~5%; footprint (3x in + 2x out)
        # = 40 MiB, so the scoped-VMEM limit must be raised explicitly.
        return 8 * _MiB, 48 * _MiB, 2, True
    if "v6" in kind:
        # v6e: 32 MiB default scoped VMEM; 4 MiB blocks -> 16 MiB footprint.
        return 4 * _MiB, None, 1, False
    if "v5" in kind:
        # v5e: 16 MiB default scoped VMEM; 2 MiB blocks -> 8 MiB footprint,
        # and at ~0.8 TB/s the per-step overhead is already <10%.
        return 2 * _MiB, None, 1, False
    # Unknown / older generations: conservative v5e-like defaults.
    return 2 * _MiB, None, 1, False


def _swish_flat_aligned(flat: jax.Array, pack: int, block_bytes: int,
                        vmem_limit, num_cores: int, deep_buffer: bool) -> jax.Array:
    """Run the kernel on a flat array whose size is a multiple of 128."""
    n = flat.size
    dt = flat.dtype
    itemsize = jnp.dtype(dt).itemsize

    # Widest lane-dense slab that still keeps at least `pack` rows.
    cols = _LANE
    for c in (2048, 1024, 512, 256):
        if n % c == 0 and n // c >= pack:
            cols = c
            break
    rows = n // cols
    x2d = flat.reshape(rows, cols)

    if rows <= pack:
        # Tiny input: single block equal to the full row extent.
        tr = rows
    else:
        # Rows per block targeting ~block_bytes, rounded to the sublane pack.
        tr = max(pack, (block_bytes // (cols * itemsize)) // pack * pack)
        if num_cores >= 2 and rows * cols * itemsize >= (1 << 20):
            # Multi-TC (v7x megacore): keep >= 2 grid steps so both cores work.
            if _cdiv(rows, tr) < 2:
                half = max(pack, _cdiv(rows // 2, pack) * pack)
                tr = min(tr, half)
            # Small odd grids (3..7 steps) leave one core idle for a round;
            # shrink tr slightly to make the step count even.
            g = _cdiv(rows, tr)
            if 2 <= g <= 8 and g % 2 == 1:
                tr_even = max(pack, _cdiv(_cdiv(rows, g + 1), pack) * pack)
                if _cdiv(rows, tr_even) % 2 == 0:
                    tr = tr_even
        if tr >= rows:
            # Single full-extent block (always a legal block shape).
            tr = rows

    grid = (_cdiv(rows, tr),)

    index_map = lambda i: (i, 0)
    if deep_buffer and grid[0] >= 3:
        # v7x only: 3-deep input buffering keeps more copies in flight.
        in_spec = pl.BlockSpec((tr, cols), index_map, pipeline_mode=pl.Buffered(3))
    else:
        in_spec = pl.BlockSpec((tr, cols), index_map)

    cp_kwargs = dict(dimension_semantics=("parallel",))
    if vmem_limit is not None:
        cp_kwargs["vmem_limit_bytes"] = vmem_limit

    out2d = pl.pallas_call(
        _swish_kernel,
        out_shape=jax.ShapeDtypeStruct((rows, cols), dt),
        grid=grid,
        in_specs=[in_spec],
        out_specs=pl.BlockSpec((tr, cols), index_map),
        compiler_params=pltpu.CompilerParams(**cp_kwargs),
    )(x2d)
    return out2d.reshape(-1)


def swish(x: jax.Array) -> jax.Array:
    """Elementwise swish: x * sigmoid(x). Same shape and dtype as input."""
    if not jnp.issubdtype(x.dtype, jnp.floating):
        raise TypeError(f"swish expects a floating-point input, got {x.dtype}")
    if x.size == 0:
        return x

    n = x.size
    pack = _sublane_pack(x.dtype)
    block_bytes, vmem_limit, n_tc, deep = _chip_config()
    flat = x.reshape(-1)

    if n % _LANE == 0:
        # Common aligned path: no pad, no slice — only the kernel's 1R+1W.
        y = _swish_flat_aligned(flat, pack, block_bytes, vmem_limit, n_tc, deep)
        return y.reshape(x.shape)

    # Ragged path (rare): kernel on the 128-aligned prefix, plain JAX on the
    # <128-element tail.  Avoids the old pad + kernel + slice (~3x HBM traffic).
    # TODO(synk): a true single-pass ragged path needs producer fusion or a
    # masked trailing block; the concat below is the one remaining extra pass.
    n_main = (n // _LANE) * _LANE
    if n_main < pack * _LANE:
        # Too small to be worth a kernel launch: one fused XLA elementwise op.
        xf = flat.astype(jnp.float32)
        return (xf * jax.nn.sigmoid(xf)).astype(x.dtype).reshape(x.shape)

    head = _swish_flat_aligned(flat[:n_main], pack, block_bytes, vmem_limit, n_tc, deep)
    tail = flat[n_main:].astype(jnp.float32)
    tail = (tail * jax.nn.sigmoid(tail)).astype(x.dtype)
    return jnp.concatenate([head, tail]).reshape(x.shape)


if __name__ == "__main__":
    key = jax.random.PRNGKey(0)
    # NCHW input, consistent with the conv-style usage in src/unet.py
    x = jax.random.normal(key, (2, 4, 16, 16), dtype=jnp.float32)

    y = swish(x)
    jax.block_until_ready(y)
    y_ref = x * jax.nn.sigmoid(x)
    assert y.shape == x.shape and y.dtype == x.dtype
    assert jnp.allclose(y, y_ref, atol=1e-6, rtol=1e-6)

    # bf16 round-trip (f32 compute inside the kernel, bf16 store).
    xb = x.astype(jnp.bfloat16)
    yb = swish(xb)
    jax.block_until_ready(yb)
    xbf = xb.astype(jnp.float32)
    yb_ref = (xbf * jax.nn.sigmoid(xbf)).astype(jnp.bfloat16)
    assert yb.shape == xb.shape and yb.dtype == jnp.bfloat16
    assert jnp.allclose(yb.astype(jnp.float32), yb_ref.astype(jnp.float32),
                        atol=2e-2, rtol=2e-2)

    # Ragged size (2057 % 128 != 0): exercises the prefix-kernel + jnp-tail path.
    xr = jax.random.normal(jax.random.PRNGKey(1), (17, 121), dtype=jnp.float32)
    yr = swish(xr)
    jax.block_until_ready(yr)
    yr_ref = xr * jax.nn.sigmoid(xr)
    assert yr.shape == xr.shape and yr.dtype == xr.dtype
    assert jnp.allclose(yr, yr_ref, atol=1e-6, rtol=1e-6)

    print("KERNEL_OK")
</pallas_src>

<mosaic_0001>
module attributes {stable_mosaic.version = 11 : i64} {
  func.func @_swish_kernel(%arg0: i32, %arg1: memref<8x256xf32, #tpu.memory_space<vmem>>, %arg2: memref<8x256xf32, #tpu.memory_space<vmem>>) attributes {dimension_semantics = [#tpu.dimension_semantics<parallel>], iteration_bounds = array<i64: 1>, scalar_prefetch = 0 : i64, scratch_operands = 0 : i64, tpu.core_type = #tpu.core_type<tc>, window_params = [{transform_indices = @transform_0, window_bounds = array<i64: 8, 256>}, {transform_indices = @transform_1, window_bounds = array<i64: 8, 256>}]} {
    %c0 = arith.constant 0 : index
    %c0_0 = arith.constant 0 : index
    %0 = vector.load %arg1[%c0, %c0_0] : memref<8x256xf32, #tpu.memory_space<vmem>>, vector<8x256xf32>
    %1 = arith.negf %0 : vector<8x256xf32>
    %2 = math.exp %1 : vector<8x256xf32>
    %cst = arith.constant 1.000000e+00 : f32
    %3 = vector.broadcast %cst : f32 to vector<8x256xf32>
    %4 = arith.addf %3, %2 : vector<8x256xf32>
    %5 = arith.divf %3, %4 : vector<8x256xf32>
    %6 = arith.mulf %0, %5 : vector<8x256xf32>
    %c0_1 = arith.constant 0 : index
    %c0_2 = arith.constant 0 : index
    %7 = vector.load %arg2[%c0_1, %c0_2] : memref<8x256xf32, #tpu.memory_space<vmem>>, vector<8x256xf32>
    tpu.vector_store %arg2[%c0_1, %c0_2], %6 {strides = array<i32>} : memref<8x256xf32, #tpu.memory_space<vmem>>, vector<8x256xf32>,
    return
  }
  func.func @transform_0(%arg0: i32) -> (i32, i32) {
    %c0_i32 = arith.constant 0 : i32
    %c0_i32_0 = arith.constant 0 : i32
    return %arg0, %c0_i32 : i32, i32
  }
  func.func @transform_1(%arg0: i32) -> (i32, i32) {
    %c0_i32 = arith.constant 0 : i32
    %c0_i32_0 = arith.constant 0 : i32
    return %arg0, %c0_i32 : i32, i32
  }
}

</mosaic_0001>

<llo_original>
// kernel: tpu_custom_call.1
$region0: #{tpu_custom_call.1}
  #allocation0 [shape = 'u32[]', space=smem, size = 0x4, offset = 0x4, fixed_abs, tag = 'smem constant byte address 0x4 - core index']
  #allocation1 [shape = 'u32[144,128]{1,0:T(1,128)}', space=vmem, size = 0x12000, scoped, tag = 'internal scratch']
  %s0 = inlined_call_operand.hbm [shape: f32[8,256], index: 0, kind: input, shape index: {}]
  %s1 = inlined_call_operand.hbm [shape: f32[8,256], index: 1, kind: output, shape index: {}]
  %s2 = sld [smem:[#allocation0]]
  $region18: #{tpu_custom_call.1} parent=0
    _
  %s4 = ssub.s32 1, %s2
  %s5 = scalar_select 0, %s4, %s2
  $region1: #{tpu_custom_call.1} parent=0
    #allocation2 [shape = 'u8[8192]{0}', space=vmem, size = 0x2000, scoped, tag = 'input window, operand 0, single buffered']
    #allocation3 [shape = 's32[1]{0}', space=sflag, size = 0x4, scoped, tag = 'scoped memory for tpu_custom_call.1']
    #allocation4 [shape = 's32[1]{0}', space=sflag, size = 0x4, scoped, tag = 'scoped memory for tpu_custom_call.1']
    #allocation5 [shape = 'u8[8192]{0}', space=vmem, size = 0x2000, scoped, tag = 'output window, operand 0, single buffered']
    %6 = vsyncpa [#allocation3], 0
    %7 = vsyncpa [#allocation4], 0
    // Predicated region
    $region2: #{tpu_custom_call.1} parent=1 // pred_check
      _
    $region3: #{tpu_custom_call.1} parent=1 // pred_check_branch
      %9 = sbr.rel (0) target = $region5
    $region4: #{tpu_custom_call.1} parent=1 // pred_region
      %s11 = ssub.s32 256, 256
      %12 = vsyncadd [#allocation3], %s11
      %s14 = sshll.u32 [#allocation2], 4
      %s15 = int_to_ptr.vmem [resolvable:$true] %s14
      %17 = dma.hbm_to_vmem [thread:$0]  %s0, 256, %s15, [#allocation3]
    $region5: #{tpu_custom_call.1} parent=1 // pred_fallthru
      _
    // Predicated region
    $region6: #{tpu_custom_call.1} parent=1 // pred_check
      _
    $region7: #{tpu_custom_call.1} parent=1 // pred_check_branch
      %19 = sbr.rel (0) target = $region9
    $region8: #{tpu_custom_call.1} parent=1 // pred_region
      %20 = dma.done [#allocation3], 256
    $region9: #{tpu_custom_call.1} parent=1 // pred_fallthru
      _
    %v21 = vld [vmem:[#allocation2] sm:$0xff]
    %v22 = vld [vmem:[#allocation2 + $0x8] sm:$0xff]
    %v23 = vxor.u32 %v21, 2147483648
    %v24 = vxor.u32 %v22, 2147483648
    %v25 = vmul.f32 %v23, 1.442695
    %v26 = vpow.pop %v25
    %v27 = vmul.f32 %v24, 1.442695
    %v28 = vpow.pop %v27
    %v29 = vadd.f32 %v26, 1.0
    %v30 = vadd.f32 %v28, 1.0
    %v31 = vrcp.pop %v29
    %v32 = vmul.f32 1.0, %v31
    %v33 = vrcp.pop %v30
    %v34 = vmul.f32 1.0, %v33
    %v35 = vmul.f32 %v21, %v32
    %v36 = vmul.f32 %v22, %v34
    %37 = vst [vmem:[#allocation5] sm:$0xff] %v35
    %38 = vst [vmem:[#allocation5 + $0x8] sm:$0xff] %v36
    // Predicated region
    $region10: #{tpu_custom_call.1} parent=1 // pred_check
      _
    $region11: #{tpu_custom_call.1} parent=1 // pred_check_branch
      %40 = sbr.rel (0) target = $region13
    $region12: #{tpu_custom_call.1} parent=1 // pred_region
      %s42 = ssub.s32 256, 256
      %43 = vsyncadd [#allocation4], %s42
      %s45 = sshll.u32 [#allocation5], 4
      %s46 = int_to_ptr.vmem [resolvable:$true] %s45
      %48 = dma.vmem_to_hbm [thread:$0]  %s46, 256, %s1, [#allocation4]
    $region13: #{tpu_custom_call.1} parent=1 // pred_fallthru
      _
    // Predicated region
    $region14: #{tpu_custom_call.1} parent=1 // pred_check
      _
    $region15: #{tpu_custom_call.1} parent=1 // pred_check_branch
      %50 = sbr.rel (0) target = $region17
    $region16: #{tpu_custom_call.1} parent=1 // pred_region
      %51 = dma.done [#allocation4], 256
    $region17: #{tpu_custom_call.1} parent=1 // pred_fallthru
      _
    %52 = vsyncpa [#allocation3], 1
    %53 = vsyncpa [#allocation4], 1

</llo_original>
